<compile_context>
chip_gen: v6e
topology: v6e:2x2x1
jax: 0.10.0
libtpu: 0.0.40
codegen_flags: <defaults>
</compile_context>

<pallas_src>
import functools

import jax
import jax.numpy as jnp
from jax.experimental import pallas as pl
from jax.experimental.pallas import tpu as pltpu

K_IN = 28 * 28   # 784 input features (left unpadded: 784 == full dim in the BlockSpec)
HIDDEN = 28      # logical hidden size of the module
H_PAD = 128      # hidden padded to one lane width
O_PAD = 128      # fc3 computed lane-dense (128 wide), then 10 lanes stored
N_OUT = 10


def _round_up(n, m):
    return (n + m - 1) // m * m


def mlp_kernel(x_ref, w1_ref, b1_ref, w2_ref, b2_ref, w3_ref, b3_ref, o_ref):
    # Cast x to bf16 in-kernel (VPU has slack); avoids a separate XLA pad/cast pass.
    x = x_ref[...].astype(jnp.bfloat16)
    # fc1 + ReLU : bf16 MXU inputs, f32 accumulation, f32 VPU elementwise.
    h1 = jnp.dot(x, w1_ref[...], preferred_element_type=jnp.float32)
    h1 = jnp.maximum(h1 + b1_ref[...], 0.0)
    # fc2 + ReLU
    h2 = jnp.dot(h1.astype(jnp.bfloat16), w2_ref[...],
                 preferred_element_type=jnp.float32)
    h2 = jnp.maximum(h2 + b2_ref[...], 0.0)
    # fc3 (no activation): lane-dense 128-wide dot, then store the first 10 lanes.
    out = jnp.dot(h2.astype(jnp.bfloat16), w3_ref[...],
                  preferred_element_type=jnp.float32) + b3_ref[...]
    o_ref[...] = out[:, :N_OUT].astype(o_ref.dtype)


def _pad2d(a, rows, cols, dtype):
    """Zero-pad a 2-D array to (rows, cols) and cast. Zero padding is exact here
    (ReLU(0) = 0 propagates zeros through the padded hidden lanes)."""
    out = jnp.zeros((rows, cols), dtype)
    return out.at[: a.shape[0], : a.shape[1]].set(a.astype(dtype))


def prepare_params(params):
    """Pad/cast weights & biases ONCE (call outside the per-batch forward)."""
    w1, b1, w2, b2, w3, b3 = params
    return (
        _pad2d(w1, K_IN, H_PAD, jnp.bfloat16),   # (784, 128): K unpadded, N lane-padded
        _pad2d(b1, 1, H_PAD, jnp.float32),
        _pad2d(w2, H_PAD, H_PAD, jnp.bfloat16),
        _pad2d(b2, 1, H_PAD, jnp.float32),
        _pad2d(w3, H_PAD, O_PAD, jnp.bfloat16),
        _pad2d(b3, 1, O_PAD, jnp.float32),
    )


@functools.partial(jax.jit, static_argnames=("tb",))
def mnist_fc_forward(x, padded_params, *, tb=1024):
    """x: [B, 1, 28, 28] or [B, 784] float32; padded_params from prepare_params.
    Returns logits [B, 10] float32."""
    w1_p, b1_p, w2_p, b2_p, w3_p, b3_p = padded_params
    B = x.shape[0]
    x2d = x.reshape(B, -1)                      # x.view(x.size(0), -1); no copy, no pad

    # Batch tile: multiple of 8 (f32 sublane). Large default amortizes the ~0.35 us
    # per-grid-step overhead (raise to 2048-4096 on v7x; still fits 32 MiB scoped VMEM).
    tb_eff = max(8, min(int(tb), _round_up(B, 8)))
    tb_eff = _round_up(tb_eff, 8)
    grid = (pl.cdiv(B, tb_eff),)                # ragged edge rows are never stored

    const = lambda shape: pl.BlockSpec(shape, lambda i: (0, 0))  # VMEM-resident weights

    cost = pl.CostEstimate(
        flops=2 * B * (K_IN * HIDDEN + HIDDEN * HIDDEN + HIDDEN * N_OUT),
        transcendentals=0,
        bytes_accessed=(x2d.size * x2d.dtype.itemsize
                        + (w1_p.size + w2_p.size + w3_p.size) * 2
                        + (b1_p.size + b2_p.size + b3_p.size) * 4
                        + B * N_OUT * 4),
    )

    return pl.pallas_call(
        mlp_kernel,
        out_shape=jax.ShapeDtypeStruct((B, N_OUT), jnp.float32),
        grid_spec=pltpu.PrefetchScalarGridSpec(
            num_scalar_prefetch=0,
            grid=grid,
            in_specs=[
                pl.BlockSpec((tb_eff, K_IN), lambda i: (i, 0)),  # x: batch-tiled, raw f32
                const((K_IN, H_PAD)),                            # w1
                const((1, H_PAD)),                               # b1
                const((H_PAD, H_PAD)),                           # w2
                const((1, H_PAD)),                               # b2
                const((H_PAD, O_PAD)),                           # w3
                const((1, O_PAD)),                               # b3
            ],
            out_specs=pl.BlockSpec((tb_eff, N_OUT), lambda i: (i, 0)),
        ),
        compiler_params=pltpu.CompilerParams(
            dimension_semantics=("parallel",),                   # megacore on v7x
        ),
        cost_estimate=cost,
    )(x2d, w1_p, b1_p, w2_p, b2_p, w3_p, b3_p)


def init_params(key, hidden_size=28):
    """Deterministic init matching nn.Linear shapes (uniform +-1/sqrt(fan_in))."""
    def linear(k, fan_in, fan_out):
        kw, kb = jax.random.split(k)
        bound = 1.0 / jnp.sqrt(float(fan_in))
        w = jax.random.uniform(kw, (fan_in, fan_out), jnp.float32, -bound, bound)
        b = jax.random.uniform(kb, (1, fan_out), jnp.float32, -bound, bound)
        return w, b

    k1, k2, k3 = jax.random.split(key, 3)
    w1, b1 = linear(k1, 28 * 28, hidden_size)      # fc1: Linear(784, 28)
    w2, b2 = linear(k2, hidden_size, hidden_size)  # fc2: Linear(28, 28)
    w3, b3 = linear(k3, hidden_size, 10)           # fc3: Linear(28, 10)
    return (w1, b1, w2, b2, w3, b3)


def reference_forward(x, params, matmul_dtype=jnp.float32):
    w1, b1, w2, b2, w3, b3 = params
    cast = lambda a: a.astype(matmul_dtype)
    h = x.reshape(x.shape[0], -1).astype(jnp.float32)
    h = jnp.maximum(
        jnp.dot(cast(h), cast(w1), preferred_element_type=jnp.float32) + b1, 0.0)
    h = jnp.maximum(
        jnp.dot(cast(h), cast(w2), preferred_element_type=jnp.float32) + b2, 0.0)
    return jnp.dot(cast(h), cast(w3), preferred_element_type=jnp.float32) + b3


if __name__ == "__main__":
    key = jax.random.PRNGKey(0)
    kx, kp = jax.random.split(key)

    # B=37 with tb=16 -> 3 grid steps including a ragged last tile (5 live rows),
    # exercising both the pipelined batch grid and the masked edge-block store.
    B = 37
    x = jax.random.normal(kx, (B, 1, 28, 28), dtype=jnp.float32)  # NCHW MNIST-like
    params = init_params(kp, hidden_size=28)
    padded = prepare_params(params)   # pad/cast weights once, outside the forward

    logits = mnist_fc_forward(x, padded, tb=16)
    logits = jax.block_until_ready(logits)
    assert logits.shape == (B, 10)
    assert bool(jnp.all(jnp.isfinite(logits)))

    # Tight check vs a bf16-matmul / f32-accumulate reference (same numerics).
    ref_bf16 = reference_forward(x, params, matmul_dtype=jnp.bfloat16)
    assert jnp.allclose(logits, ref_bf16, atol=2e-3, rtol=2e-3)
    # Loose sanity check vs the pure-f32 reference (bf16 quantization error only).
    ref_f32 = reference_forward(x, params, matmul_dtype=jnp.float32)
    assert jnp.allclose(logits, ref_f32, atol=5e-2, rtol=5e-2)

    print("KERNEL_OK")
</pallas_src>

<mosaic_0001>
module attributes {stable_mosaic.version = 11 : i64} {
  func.func @mlp_kernel(%arg0: i32, %arg1: memref<16x784xf32, #tpu.memory_space<vmem>>, %arg2: memref<784x128xbf16, #tpu.memory_space<vmem>>, %arg3: memref<1x128xf32, #tpu.memory_space<vmem>>, %arg4: memref<128x128xbf16, #tpu.memory_space<vmem>>, %arg5: memref<1x128xf32, #tpu.memory_space<vmem>>, %arg6: memref<128x128xbf16, #tpu.memory_space<vmem>>, %arg7: memref<1x128xf32, #tpu.memory_space<vmem>>, %arg8: memref<16x10xf32, #tpu.memory_space<vmem>>) attributes {dimension_semantics = [#tpu.dimension_semantics<parallel>], iteration_bounds = array<i64: 3>, scalar_prefetch = 0 : i64, scratch_operands = 0 : i64, tpu.core_type = #tpu.core_type<tc>, window_params = [{transform_indices = @transform_0, window_bounds = array<i64: 16, 784>}, {pipeline_mode = #tpu.pipeline_mode<synchronous>, transform_indices = @transform_1, window_bounds = array<i64: 784, 128>}, {pipeline_mode = #tpu.pipeline_mode<synchronous>, transform_indices = @transform_2, window_bounds = array<i64: 1, 128>}, {pipeline_mode = #tpu.pipeline_mode<synchronous>, transform_indices = @transform_3, window_bounds = array<i64: 128, 128>}, {pipeline_mode = #tpu.pipeline_mode<synchronous>, transform_indices = @transform_4, window_bounds = array<i64: 1, 128>}, {pipeline_mode = #tpu.pipeline_mode<synchronous>, transform_indices = @transform_5, window_bounds = array<i64: 128, 128>}, {pipeline_mode = #tpu.pipeline_mode<synchronous>, transform_indices = @transform_6, window_bounds = array<i64: 1, 128>}, {transform_indices = @transform_7, window_bounds = array<i64: 16, 10>}]} {
    %c0 = arith.constant 0 : index
    %c0_0 = arith.constant 0 : index
    %0 = vector.load %arg1[%c0, %c0_0] : memref<16x784xf32, #tpu.memory_space<vmem>>, vector<16x784xf32>
    %1 = arith.truncf %0 : vector<16x784xf32> to vector<16x784xbf16>
    %c0_1 = arith.constant 0 : index
    %c0_2 = arith.constant 0 : index
    %2 = vector.load %arg2[%c0_1, %c0_2] : memref<784x128xbf16, #tpu.memory_space<vmem>>, vector<784x128xbf16>
    %cst = arith.constant dense<0.000000e+00> : vector<16x128xf32>
    %3 = tpu.matmul %1, %2, %cst {dimension_numbers = #tpu.dot_dimension_numbers<[1], [0], [0], [1], [0, 0, 1, 1], [], []>} : vector<16x784xbf16>, vector<784x128xbf16>, vector<16x128xf32> -> vector<16x128xf32>
    %c0_3 = arith.constant 0 : index
    %c0_4 = arith.constant 0 : index
    %4 = vector.load %arg3[%c0_3, %c0_4] : memref<1x128xf32, #tpu.memory_space<vmem>>, vector<1x128xf32>
    %5 = vector.broadcast %4 : vector<1x128xf32> to vector<16x128xf32>
    %6 = arith.addf %3, %5 : vector<16x128xf32>
    %cst_5 = arith.constant 0.000000e+00 : f32
    %7 = vector.broadcast %cst_5 : f32 to vector<16x128xf32>
    %8 = arith.maximumf %6, %7 : vector<16x128xf32>
    %9 = arith.truncf %8 : vector<16x128xf32> to vector<16x128xbf16>
    %c0_6 = arith.constant 0 : index
    %c0_7 = arith.constant 0 : index
    %10 = vector.load %arg4[%c0_6, %c0_7] : memref<128x128xbf16, #tpu.memory_space<vmem>>, vector<128x128xbf16>
    %cst_8 = arith.constant dense<0.000000e+00> : vector<16x128xf32>
    %11 = tpu.matmul %9, %10, %cst_8 {dimension_numbers = #tpu.dot_dimension_numbers<[1], [0], [0], [1], [0, 0, 1, 1], [], []>} : vector<16x128xbf16>, vector<128x128xbf16>, vector<16x128xf32> -> vector<16x128xf32>
    %c0_9 = arith.constant 0 : index
    %c0_10 = arith.constant 0 : index
    %12 = vector.load %arg5[%c0_9, %c0_10] : memref<1x128xf32, #tpu.memory_space<vmem>>, vector<1x128xf32>
    %13 = vector.broadcast %12 : vector<1x128xf32> to vector<16x128xf32>
    %14 = arith.addf %11, %13 : vector<16x128xf32>
    %cst_11 = arith.constant 0.000000e+00 : f32
    %15 = vector.broadcast %cst_11 : f32 to vector<16x128xf32>
    %16 = arith.maximumf %14, %15 : vector<16x128xf32>
    %17 = arith.truncf %16 : vector<16x128xf32> to vector<16x128xbf16>
    %c0_12 = arith.constant 0 : index
    %c0_13 = arith.constant 0 : index
    %18 = vector.load %arg6[%c0_12, %c0_13] : memref<128x128xbf16, #tpu.memory_space<vmem>>, vector<128x128xbf16>
    %cst_14 = arith.constant dense<0.000000e+00> : vector<16x128xf32>
    %19 = tpu.matmul %17, %18, %cst_14 {dimension_numbers = #tpu.dot_dimension_numbers<[1], [0], [0], [1], [0, 0, 1, 1], [], []>} : vector<16x128xbf16>, vector<128x128xbf16>, vector<16x128xf32> -> vector<16x128xf32>
    %c0_15 = arith.constant 0 : index
    %c0_16 = arith.constant 0 : index
    %20 = vector.load %arg7[%c0_15, %c0_16] : memref<1x128xf32, #tpu.memory_space<vmem>>, vector<1x128xf32>
    %21 = vector.broadcast %20 : vector<1x128xf32> to vector<16x128xf32>
    %22 = arith.addf %19, %21 : vector<16x128xf32>
    %23 = vector.extract_strided_slice %22 {offsets = [0, 0], sizes = [16, 10], strides = [1, 1]} : vector<16x128xf32> to vector<16x10xf32>
    %c0_17 = arith.constant 0 : index
    %c0_18 = arith.constant 0 : index
    %24 = vector.load %arg8[%c0_17, %c0_18] : memref<16x10xf32, #tpu.memory_space<vmem>>, vector<16x10xf32>
    tpu.vector_store %arg8[%c0_17, %c0_18], %23 {strides = array<i32>} : memref<16x10xf32, #tpu.memory_space<vmem>>, vector<16x10xf32>,
    return
  }
  func.func @transform_0(%arg0: i32) -> (i32, i32) {
    %c0_i32 = arith.constant 0 : i32
    %c0_i32_0 = arith.constant 0 : i32
    return %arg0, %c0_i32 : i32, i32
  }
  func.func @transform_1(%arg0: i32) -> (i32, i32) {
    %c0_i32 = arith.constant 0 : i32
    %c0_i32_0 = arith.constant 0 : i32
    %c0_i32_1 = arith.constant 0 : i32
    return %c0_i32, %c0_i32_0 : i32, i32
  }
  func.func @transform_2(%arg0: i32) -> (i32, i32) {
    %c0_i32 = arith.constant 0 : i32
    %c0_i32_0 = arith.constant 0 : i32
    %c0_i32_1 = arith.constant 0 : i32
    return %c0_i32, %c0_i32_0 : i32, i32
  }
  func.func @transform_3(%arg0: i32) -> (i32, i32) {
    %c0_i32 = arith.constant 0 : i32
    %c0_i32_0 = arith.constant 0 : i32
    %c0_i32_1 = arith.constant 0 : i32
    return %c0_i32, %c0_i32_0 : i32, i32
  }
  func.func @transform_4(%arg0: i32) -> (i32, i32) {
    %c0_i32 = arith.constant 0 : i32
    %c0_i32_0 = arith.constant 0 : i32
    %c0_i32_1 = arith.constant 0 : i32
    return %c0_i32, %c0_i32_0 : i32, i32
  }
  func.func @transform_5(%arg0: i32) -> (i32, i32) {
    %c0_i32 = arith.constant 0 : i32
    %c0_i32_0 = arith.constant 0 : i32
    %c0_i32_1 = arith.constant 0 : i32
    return %c0_i32, %c0_i32_0 : i32, i32
  }
  func.func @transform_6(%arg0: i32) -> (i32, i32) {
    %c0_i32 = arith.constant 0 : i32
    %c0_i32_0 = arith.constant 0 : i32
    %c0_i32_1 = arith.constant 0 : i32
    return %c0_i32, %c0_i32_0 : i32, i32
  }
  func.func @transform_7(%arg0: i32) -> (i32, i32) {
    %c0_i32 = arith.constant 0 : i32
    %c0_i32_0 = arith.constant 0 : i32
    return %arg0, %c0_i32 : i32, i32
  }
}

</mosaic_0001>

<llo_original>
// kernel: mnist_fc_forward.1
$region0: #{mnist_fc_forward.1}
  #allocation0 [shape = 'u32[]', space=smem, size = 0x4, offset = 0x4, fixed_abs, tag = 'smem constant byte address 0x4 - core index']
  #allocation1 [shape = 'u32[144,128]{1,0:T(1,128)}', space=vmem, size = 0x12000, scoped, tag = 'internal scratch']
  %s0 = inlined_call_operand.vmem [shape: f32[37,784], index: 0, kind: input, shape index: {}]
  %s1 = inlined_call_operand.vmem [shape: bf16[784,128], index: 1, kind: input, shape index: {}]
  %s2 = inlined_call_operand.vmem [shape: f32[1,128], index: 2, kind: input, shape index: {}]
  %s3 = inlined_call_operand.vmem [shape: bf16[128,128], index: 3, kind: input, shape index: {}]
  %s4 = inlined_call_operand.vmem [shape: f32[1,128], index: 4, kind: input, shape index: {}]
  %s5 = inlined_call_operand.vmem [shape: bf16[128,128], index: 5, kind: input, shape index: {}]
  %s6 = inlined_call_operand.vmem [shape: f32[1,128], index: 6, kind: input, shape index: {}]
  %s7 = inlined_call_operand.vmem [shape: f32[37,10], index: 7, kind: output, shape index: {}]
  %s8 = sld [smem:[#allocation0]]
  $region109: #{mnist_fc_forward.1} parent=0
    _
  %s10 = ssub.s32 1, %s8
  %s11 = scalar_select 0, %s10, %s8
  $region1: #{mnist_fc_forward.1} parent=0
    #allocation2 [shape = 'u8[16384]{0}', space=vmem, size = 0x4000, scoped, tag = 'output window, operand 0']
    loop: start=0, step=1, limit=5
    $region2: #{mnist_fc_forward.1} parent=1 // loop_pre_header
      _
    $region3: #{mnist_fc_forward.1} parent=1 // loop_header
      %s13 = sphi 0, %s17
      %p14 = scmp.ge.s32.totalorder %s13, 5
      %s23 = sphi 0, %s25
      %s26 = sphi 0, %s23
      %s27 = sphi 0, %s26
      %s43 = sphi 0, %s27
      %s47 = sphi 0, %s47
      %s49 = sphi 0, %s47
      %s50 = sphi 0, %s49
      %s64 = sphi 0, %s50
      %s68 = sphi 0, %s68
      %s70 = sphi 0, %s68
      %s71 = sphi 0, %s70
      %s85 = sphi 0, %s71
      %s89 = sphi 0, %s89
      %s91 = sphi 0, %s89
      %s92 = sphi 0, %s91
      %s106 = sphi 0, %s92
      %s110 = sphi 0, %s110
      %s112 = sphi 0, %s110
      %s113 = sphi 0, %s112
      %s127 = sphi 0, %s113
      %s131 = sphi 0, %s131
      %s133 = sphi 0, %s131
      %s134 = sphi 0, %s133
      %s148 = sphi 0, %s134
      %s152 = sphi 0, %s152
      %s154 = sphi 0, %s152
      %s155 = sphi 0, %s154
      %s169 = sphi 0, %s155
      %s175 = sphi 0, %s177
      %s178 = sphi 0, %s175
      %s179 = sphi 0, %s178
      %s195 = sphi 0, %s179
    $region4: #{mnist_fc_forward.1} parent=1 // loop_header_branch
      %16 = sbr.rel (%p14) target = $region8
    $region5: #{mnist_fc_forward.1} parent=1 // loop_body
      %s18 = ssub.s32 %s13, 1
      %s19 = ssub.s32 %s13, 2
      %s20 = sadd.s32 %s13, 1
      %s21 = ssub.s32 %s13, %s20
      %p22 = scmp.eq.s32.totalorder %s21, 0
      %s24 = sadd.s32 %s23, 1
      %s25 = scalar_select %p22, %s23, %s24
      %p28 = pneg %p22
      %p29 = scmp.eq.s32.totalorder %s13, 2
      %p30 = por %p28, %p29
      %p31 = scmp.ne.s32.totalorder %s23, %s26
      %p32 = scmp.eq.s32.totalorder %s13, 0
      %p33 = por %p31, %p32
      %p34 = scmp.ne.s32.totalorder %s23, %s26
      %p35 = scmp.eq.s32.totalorder %s18, 2
      %p36 = por %p34, %p35
      %p37 = scmp.ne.s32.totalorder %s26, %s27
      %p38 = scmp.eq.s32.totalorder %s18, 0
      %p39 = por %p37, %p38
      %p40 = scmp.ne.s32.totalorder %s26, %s27
      %p41 = scmp.eq.s32.totalorder %s19, 2
      %p42 = por %p40, %p41
      %p44 = scmp.ne.s32.totalorder %s27, %s43
      %p45 = scmp.eq.s32.totalorder %s19, 0
      %p46 = por %p44, %p45
      %s48 = sadd.s32 %s47, 1
      %p51 = scmp.eq.s32.totalorder %s13, 2
      %p52 = scmp.ne.s32.totalorder %s47, %s49
      %p53 = scmp.eq.s32.totalorder %s13, 0
      %p54 = por %p52, %p53
      %p55 = scmp.ne.s32.totalorder %s47, %s49
      %p56 = scmp.eq.s32.totalorder %s18, 2
      %p57 = por %p55, %p56
      %p58 = scmp.ne.s32.totalorder %s49, %s50
      %p59 = scmp.eq.s32.totalorder %s18, 0
      %p60 = por %p58, %p59
      %p61 = scmp.ne.s32.totalorder %s49, %s50
      %p62 = scmp.eq.s32.totalorder %s19, 2
      %p63 = por %p61, %p62
      %p65 = scmp.ne.s32.totalorder %s50, %s64
      %p66 = scmp.eq.s32.totalorder %s19, 0
      %p67 = por %p65, %p66
      %s69 = sadd.s32 %s68, 1
      %p72 = scmp.eq.s32.totalorder %s13, 2
      %p73 = scmp.ne.s32.totalorder %s68, %s70
      %p74 = scmp.eq.s32.totalorder %s13, 0
      %p75 = por %p73, %p74
      %p76 = scmp.ne.s32.totalorder %s68, %s70
      %p77 = scmp.eq.s32.totalorder %s18, 2
      %p78 = por %p76, %p77
      %p79 = scmp.ne.s32.totalorder %s70, %s71
      %p80 = scmp.eq.s32.totalorder %s18, 0
      %p81 = por %p79, %p80
      %p82 = scmp.ne.s32.totalorder %s70, %s71
      %p83 = scmp.eq.s32.totalorder %s19, 2
      %p84 = por %p82, %p83
      %p86 = scmp.ne.s32.totalorder %s71, %s85
      %p87 = scmp.eq.s32.totalorder %s19, 0
      %p88 = por %p86, %p87
      %s90 = sadd.s32 %s89, 1
      %p93 = scmp.eq.s32.totalorder %s13, 2
      %p94 = scmp.ne.s32.totalorder %s89, %s91
      %p95 = scmp.eq.s32.totalorder %s13, 0
      %p96 = por %p94, %p95
      %p97 = scmp.ne.s32.totalorder %s89, %s91
      %p98 = scmp.eq.s32.totalorder %s18, 2
      %p99 = por %p97, %p98
      %p100 = scmp.ne.s32.totalorder %s91, %s92
      %p101 = scmp.eq.s32.totalorder %s18, 0
      %p102 = por %p100, %p101
      %p103 = scmp.ne.s32.totalorder %s91, %s92
      %p104 = scmp.eq.s32.totalorder %s19, 2
      %p105 = por %p103, %p104
      %p107 = scmp.ne.s32.totalorder %s92, %s106
      %p108 = scmp.eq.s32.totalorder %s19, 0
      %p109 = por %p107, %p108
      %s111 = sadd.s32 %s110, 1
      %p114 = scmp.eq.s32.totalorder %s13, 2
      %p115 = scmp.ne.s32.totalorder %s110, %s112
      %p116 = scmp.eq.s32.totalorder %s13, 0
      %p117 = por %p115, %p116
      %p118 = scmp.ne.s32.totalorder %s110, %s112
      %p119 = scmp.eq.s32.totalorder %s18, 2
      %p120 = por %p118, %p119
      %p121 = scmp.ne.s32.totalorder %s112, %s113
      %p122 = scmp.eq.s32.totalorder %s18, 0
      %p123 = por %p121, %p122
      %p124 = scmp.ne.s32.totalorder %s112, %s113
      %p125 = scmp.eq.s32.totalorder %s19, 2
      %p126 = por %p124, %p125
      %p128 = scmp.ne.s32.totalorder %s113, %s127
      %p129 = scmp.eq.s32.totalorder %s19, 0
      %p130 = por %p128, %p129
      %s132 = sadd.s32 %s131, 1
      %p135 = scmp.eq.s32.totalorder %s13, 2
      %p136 = scmp.ne.s32.totalorder %s131, %s133
      %p137 = scmp.eq.s32.totalorder %s13, 0
      %p138 = por %p136, %p137
      %p139 = scmp.ne.s32.totalorder %s131, %s133
      %p140 = scmp.eq.s32.totalorder %s18, 2
      %p141 = por %p139, %p140
      %p142 = scmp.ne.s32.totalorder %s133, %s134
      %p143 = scmp.eq.s32.totalorder %s18, 0
      %p144 = por %p142, %p143
      %p145 = scmp.ne.s32.totalorder %s133, %s134
      %p146 = scmp.eq.s32.totalorder %s19, 2
      %p147 = por %p145, %p146
      %p149 = scmp.ne.s32.totalorder %s134, %s148
      %p150 = scmp.eq.s32.totalorder %s19, 0
      %p151 = por %p149, %p150
      %s153 = sadd.s32 %s152, 1
      %p156 = scmp.eq.s32.totalorder %s13, 2
      %p157 = scmp.ne.s32.totalorder %s152, %s154
      %p158 = scmp.eq.s32.totalorder %s13, 0
      %p159 = por %p157, %p158
      %p160 = scmp.ne.s32.totalorder %s152, %s154
      %p161 = scmp.eq.s32.totalorder %s18, 2
      %p162 = por %p160, %p161
      %p163 = scmp.ne.s32.totalorder %s154, %s155
      %p164 = scmp.eq.s32.totalorder %s18, 0
      %p165 = por %p163, %p164
      %p166 = scmp.ne.s32.totalorder %s154, %s155
      %p167 = scmp.eq.s32.totalorder %s19, 2
      %p168 = por %p166, %p167
      %p170 = scmp.ne.s32.totalorder %s155, %s169
      %p171 = scmp.eq.s32.totalorder %s19, 0
      %p172 = por %p170, %p171
      %s173 = ssub.s32 %s13, %s20
      %p174 = scmp.eq.s32.totalorder %s173, 0
      %s176 = sadd.s32 %s175, 1
      %s177 = scalar_select %p174, %s175, %s176
      %p180 = pneg %p174
      %p181 = scmp.eq.s32.totalorder %s13, 2
      %p182 = por %p180, %p181
      %p183 = scmp.ne.s32.totalorder %s175, %s178
      %p184 = scmp.eq.s32.totalorder %s13, 0
      %p185 = por %p183, %p184
      %p186 = scmp.ne.s32.totalorder %s175, %s178
      %p187 = scmp.eq.s32.totalorder %s18, 2
      %p188 = por %p186, %p187
      %p189 = scmp.ne.s32.totalorder %s178, %s179
      %p190 = scmp.eq.s32.totalorder %s18, 0
      %p191 = por %p189, %p190
      %p192 = scmp.ne.s32.totalorder %s178, %s179
      %p193 = scmp.eq.s32.totalorder %s19, 2
      %p194 = por %p192, %p193
      %p196 = scmp.ne.s32.totalorder %s179, %s195
      %p197 = scmp.eq.s32.totalorder %s19, 0
      %p198 = por %p196, %p197
      %p199 = scmp.le.s32.totalorder 1, %s13
      %p200 = scmp.lt.s32.totalorder %s13, 4
      %p201 = pnand %p199, %p200
      %p202 = pneg %p201
      // Predicated region
      $region9: #{mnist_fc_forward.1} parent=5 // pred_check
        _
      $region10: #{mnist_fc_forward.1} parent=5 // pred_check_branch
        %204 = sbr.rel (%p201) target = $region12
      $region11: #{mnist_fc_forward.1} parent=5 // pred_region
        %s205 = ssub.s32 %s13, 1
        // Predicated region
        $region13: #{mnist_fc_forward.1} parent=11 // pred_check
          %p206 = pneg %p60
        $region14: #{mnist_fc_forward.1} parent=11 // pred_check_branch
          %208 = sbr.rel (%p206) target = $region16
        $region15: #{mnist_fc_forward.1} parent=11 // pred_region
          _
        $region16: #{mnist_fc_forward.1} parent=11 // pred_fallthru
          _
        // Predicated region
        $region17: #{mnist_fc_forward.1} parent=11 // pred_check
          %p209 = pneg %p81
        $region18: #{mnist_fc_forward.1} parent=11 // pred_check_branch
          %211 = sbr.rel (%p209) target = $region20
        $region19: #{mnist_fc_forward.1} parent=11 // pred_region
          _
        $region20: #{mnist_fc_forward.1} parent=11 // pred_fallthru
          _
        // Predicated region
        $region21: #{mnist_fc_forward.1} parent=11 // pred_check
          %p212 = pneg %p102
        $region22: #{mnist_fc_forward.1} parent=11 // pred_check_branch
          %214 = sbr.rel (%p212) target = $region24
        $region23: #{mnist_fc_forward.1} parent=11 // pred_region
          _
        $region24: #{mnist_fc_forward.1} parent=11 // pred_fallthru
          _
        // Predicated region
        $region25: #{mnist_fc_forward.1} parent=11 // pred_check
          %p215 = pneg %p123
        $region26: #{mnist_fc_forward.1} parent=11 // pred_check_branch
          %217 = sbr.rel (%p215) target = $region28
        $region27: #{mnist_fc_forward.1} parent=11 // pred_region
          _
        $region28: #{mnist_fc_forward.1} parent=11 // pred_fallthru
          _
        // Predicated region
        $region29: #{mnist_fc_forward.1} parent=11 // pred_check
          %p218 = pneg %p144
        $region30: #{mnist_fc_forward.1} parent=11 // pred_check_branch
          %220 = sbr.rel (%p218) target = $region32
        $region31: #{mnist_fc_forward.1} parent=11 // pred_region
          _
        $region32: #{mnist_fc_forward.1} parent=11 // pred_fallthru
          _
        // Predicated region
        $region33: #{mnist_fc_forward.1} parent=11 // pred_check
          %p221 = pneg %p165
        $region34: #{mnist_fc_forward.1} parent=11 // pred_check_branch
          %223 = sbr.rel (%p221) target = $region36
        $region35: #{mnist_fc_forward.1} parent=11 // pred_region
          _
        $region36: #{mnist_fc_forward.1} parent=11 // pred_fallthru
          _
      $region12: #{mnist_fc_forward.1} parent=5 // pred_fallthru
        _
      %p224 = scmp.lt.s32.totalorder %s13, 3
      // Predicated region
      $region37: #{mnist_fc_forward.1} parent=5 // pred_check
        %p225 = pneg %p224
      $region38: #{mnist_fc_forward.1} parent=5 // pred_check_branch
        %227 = sbr.rel (%p225) target = $region40
      $region39: #{mnist_fc_forward.1} parent=5 // pred_region
        // Predicated region
        $region41: #{mnist_fc_forward.1} parent=39 // pred_check
          %p228 = pneg %p33
        $region42: #{mnist_fc_forward.1} parent=39 // pred_check_branch
          %230 = sbr.rel (%p228) target = $region44
        $region43: #{mnist_fc_forward.1} parent=39 // pred_region
          %s231 = smul.u32 2, %s13
          %s232 = ssub.s32 5, %s231
          %p233 = scmp.lt.s32.totalorder %s232, 2
          %s234 = scalar_select %p233, %s232, 2
          %s235 = smul.u32 128, %s234
          %s236 = smul.u32 %s235, 7
          %p237 = scmp.lt.s32.totalorder %s231, 4
          %s238 = scalar_select %p237, %s231, 4
          %s239 = smul.addr %s238, 7
          %s240 = smul.addr %s239, 8
          %s241 = scalar_lea.vmem %s0, %s240
          %s242 = smul.u32 2, %s13
          %s243 = ssub.s32 5, %s242
          %p244 = scmp.lt.s32.totalorder %s243, 2
          %s245 = scalar_select %p244, %s243, 2
          %s246 = smul.u32 128, %s245
          %s247 = smul.u32 %s246, 7
        $region44: #{mnist_fc_forward.1} parent=39 // pred_fallthru
          _
      $region40: #{mnist_fc_forward.1} parent=5 // pred_fallthru
        _
      %p248 = scmp.le.s32.totalorder 1, %s13
      %p249 = scmp.lt.s32.totalorder %s13, 4
      %p250 = pnand %p248, %p249
      %p251 = pneg %p250
      // Predicated region
      $region45: #{mnist_fc_forward.1} parent=5 // pred_check
        _
      $region46: #{mnist_fc_forward.1} parent=5 // pred_check_branch
        %253 = sbr.rel (%p250) target = $region48
      $region47: #{mnist_fc_forward.1} parent=5 // pred_region
        %s254 = ssub.s32 %s13, 1
        %s255 = smul.u32 2, %s18
        %s256 = ssub.s32 5, %s255
        %p257 = scmp.lt.s32.totalorder %s256, 2
        %s258 = scalar_select %p257, %s256, 2
        %s259 = smul.u32 128, %s258
        %s260 = smul.u32 %s259, 7
        %p261 = scmp.lt.s32.totalorder %s255, 4
        %s262 = scalar_select %p261, %s255, 4
        %s263 = smul.addr %s262, 7
        %s264 = smul.addr %s263, 8
        %s265 = scalar_lea.vmem %s0, %s264
        %p266 = pneg %p39
        %p267 = pneg %p36
        %p268 = pneg %p60
        %p269 = pneg %p57
        %p270 = pneg %p81
        %p271 = pneg %p78
        %p272 = pneg %p102
        %p273 = pneg %p99
        %p274 = pneg %p123
        %p275 = pneg %p120
        %p276 = pneg %p144
        %p277 = pneg %p141
        %p278 = pneg %p165
        %p279 = pneg %p162
        %p280 = pneg %p191
        %p281 = pneg %p188
        %s282 = sand.u32 %s178, 1
        %s283 = sand.u32 %s178, 1
        %s284 = smul.addr %s283, 16
        %s285 = scalar_lea.vmem [#allocation2], %s284
        %s286 = smul.u32 2, %s18
        %s287 = ssub.s32 5, %s286
        %p288 = scmp.lt.s32.totalorder %s287, 2
        %s289 = scalar_select %p288, %s287, 2
        %s290 = smul.u32 128, %s289
        %s291 = smul.u32 %s290, 7
        %p292 = scmp.lt.s32.totalorder %s286, 4
        %s293 = scalar_select %p292, %s286, 4
        %s294 = smul.addr %s293, 7
        %s295 = smul.addr %s294, 8
        %s296 = scalar_lea.vmem %s0, %s295
        %s297 = smul.u32 2, %s18
        %s298 = ssub.s32 5, %s297
        %p299 = scmp.lt.s32.totalorder %s298, 2
        %s300 = scalar_select %p299, %s298, 2
        %s301 = smul.u32 128, %s300
        %s302 = smul.u32 %s301, 7
        %s303 = smul.u32 2, %s18
        %s304 = ssub.s32 5, %s303
        %p305 = scmp.lt.s32.totalorder %s304, 2
        %s306 = scalar_select %p305, %s304, 2
        %s307 = smul.u32 128, %s306
        %v309 = vld [vmem:[%s296] sm:$0xff]
        %v310 = vld [vmem:[%s296 + $0x8] sm:$0xff]
        %v311 = vld [vmem:[%s296 + $0x10] sm:$0xff]
        %v312 = vld [vmem:[%s296 + $0x18] sm:$0xff]
        %v313 = vld [vmem:[%s296 + $0x20] sm:$0xff]
        %v314 = vld [vmem:[%s296 + $0x28] sm:$0xff]
        %v315 = vld [vmem:[%s296 + $0x30] sm:$0xff]
        %v316 = vld [vmem:[%s296 + $0x38] sm:$0xff]
        %v317 = vld [vmem:[%s296 + $0x40] sm:$0xff]
        %v318 = vld [vmem:[%s296 + $0x48] sm:$0xff]
        %v319 = vld [vmem:[%s296 + $0x50] sm:$0xff]
        %v320 = vld [vmem:[%s296 + $0x58] sm:$0xff]
        %v321 = vld [vmem:[%s296 + $0x60] sm:$0xff]
        %v322 = vld [vmem:[%s296 + $0x68] sm:$0xff]
        %v323 = vpack.c.bf16 %v316, %v309
        %v324 = vpack.c.bf16 %v317, %v310
        %v325 = vpack.c.bf16 %v318, %v311
        %v326 = vpack.c.bf16 %v319, %v312
        %v327 = vpack.c.bf16 %v320, %v313
        %v328 = vpack.c.bf16 %v321, %v314
        %v329 = vpack.c.bf16 %v322, %v315
        %v330 = vld [vmem:[%s1] sm:$0xf]
        %v331 = vld [vmem:[%s1 + $0x4] sm:$0xf]
        %v332 = vld [vmem:[%s1 + $0x8] sm:$0xf]
        %v333 = vld [vmem:[%s1 + $0xc] sm:$0xf]
        %v334 = vld [vmem:[%s1 + $0x10] sm:$0xf]
        %v335 = vld [vmem:[%s1 + $0x14] sm:$0xf]
        %v336 = vld [vmem:[%s1 + $0x18] sm:$0xf]
        %v337 = vld [vmem:[%s1 + $0x1c] sm:$0xf]
        %v338 = vld [vmem:[%s1 + $0x20] sm:$0xf]
        %v339 = vld [vmem:[%s1 + $0x24] sm:$0xf]
        %v340 = vld [vmem:[%s1 + $0x28] sm:$0xf]
        %v341 = vld [vmem:[%s1 + $0x2c] sm:$0xf]
        %v342 = vld [vmem:[%s1 + $0x30] sm:$0xf]
        %v343 = vld [vmem:[%s1 + $0x34] sm:$0xf]
        %v344 = vld [vmem:[%s1 + $0x38] sm:$0xf]
        %v345 = vld [vmem:[%s1 + $0x3c] sm:$0xf]
        %v346 = vld [vmem:[%s1 + $0x40] sm:$0xf]
        %v347 = vld [vmem:[%s1 + $0x44] sm:$0xf]
        %v348 = vld [vmem:[%s1 + $0x48] sm:$0xf]
        %v349 = vld [vmem:[%s1 + $0x4c] sm:$0xf]
        %v350 = vld [vmem:[%s1 + $0x50] sm:$0xf]
        %v351 = vld [vmem:[%s1 + $0x54] sm:$0xf]
        %v352 = vld [vmem:[%s1 + $0x58] sm:$0xf]
        %v353 = vld [vmem:[%s1 + $0x5c] sm:$0xf]
        %v354 = vld [vmem:[%s1 + $0x60] sm:$0xf]
        %v355 = vld [vmem:[%s1 + $0x64] sm:$0xf]
        %v356 = vld [vmem:[%s1 + $0x68] sm:$0xf]
        %v357 = vld [vmem:[%s1 + $0x6c] sm:$0xf]
        %v358 = vld [vmem:[%s1 + $0x70] sm:$0xf]
        %v359 = vld [vmem:[%s1 + $0x74] sm:$0xf]
        %v360 = vld [vmem:[%s1 + $0x78] sm:$0xf]
        %v361 = vld [vmem:[%s1 + $0x7c] sm:$0xf]
        %v362 = vld [vmem:[%s1 + $0x80] sm:$0xf]
        %v363 = vld [vmem:[%s1 + $0x84] sm:$0xf]
        %v364 = vld [vmem:[%s1 + $0x88] sm:$0xf]
        %v365 = vld [vmem:[%s1 + $0x8c] sm:$0xf]
        %v366 = vld [vmem:[%s1 + $0x90] sm:$0xf]
        %v367 = vld [vmem:[%s1 + $0x94] sm:$0xf]
        %v368 = vld [vmem:[%s1 + $0x98] sm:$0xf]
        %v369 = vld [vmem:[%s1 + $0x9c] sm:$0xf]
        %v370 = vld [vmem:[%s1 + $0xa0] sm:$0xf]
        %v371 = vld [vmem:[%s1 + $0xa4] sm:$0xf]
        %v372 = vld [vmem:[%s1 + $0xa8] sm:$0xf]
        %v373 = vld [vmem:[%s1 + $0xac] sm:$0xf]
        %v374 = vld [vmem:[%s1 + $0xb0] sm:$0xf]
        %v375 = vld [vmem:[%s1 + $0xb4] sm:$0xf]
        %v376 = vld [vmem:[%s1 + $0xb8] sm:$0xf]
        %v377 = vld [vmem:[%s1 + $0xbc] sm:$0xf]
        %v378 = vld [vmem:[%s1 + $0xc0] sm:$0xf]
        %v379 = vld [vmem:[%s1 + $0xc4] sm:$0xf]
        %v380 = vld [vmem:[%s1 + $0xc8] sm:$0xf]
        %v381 = vld [vmem:[%s1 + $0xcc] sm:$0xf]
        %v382 = vld [vmem:[%s1 + $0xd0] sm:$0xf]
        %v383 = vld [vmem:[%s1 + $0xd4] sm:$0xf]
        %v384 = vld [vmem:[%s1 + $0xd8] sm:$0xf]
        %v385 = vld [vmem:[%s1 + $0xdc] sm:$0xf]
        %v386 = vld [vmem:[%s1 + $0xe0] sm:$0xf]
        %v387 = vld [vmem:[%s1 + $0xe4] sm:$0xf]
        %v388 = vld [vmem:[%s1 + $0xe8] sm:$0xf]
        %v389 = vld [vmem:[%s1 + $0xec] sm:$0xf]
        %v390 = vld [vmem:[%s1 + $0xf0] sm:$0xf]
        %v391 = vld [vmem:[%s1 + $0xf4] sm:$0xf]
        %v392 = vld [vmem:[%s1 + $0xf8] sm:$0xf]
        %v393 = vld [vmem:[%s1 + $0xfc] sm:$0xf]
        %v394 = vld [vmem:[%s1 + $0x100] sm:$0xf]
        %v395 = vld [vmem:[%s1 + $0x104] sm:$0xf]
        %v396 = vld [vmem:[%s1 + $0x108] sm:$0xf]
        %v397 = vld [vmem:[%s1 + $0x10c] sm:$0xf]
        %v398 = vld [vmem:[%s1 + $0x110] sm:$0xf]
        %v399 = vld [vmem:[%s1 + $0x114] sm:$0xf]
        %v400 = vld [vmem:[%s1 + $0x118] sm:$0xf]
        %v401 = vld [vmem:[%s1 + $0x11c] sm:$0xf]
        %v402 = vld [vmem:[%s1 + $0x120] sm:$0xf]
        %v403 = vld [vmem:[%s1 + $0x124] sm:$0xf]
        %v404 = vld [vmem:[%s1 + $0x128] sm:$0xf]
        %v405 = vld [vmem:[%s1 + $0x12c] sm:$0xf]
        %v406 = vld [vmem:[%s1 + $0x130] sm:$0xf]
        %v407 = vld [vmem:[%s1 + $0x134] sm:$0xf]
        %v408 = vld [vmem:[%s1 + $0x138] sm:$0xf]
        %v409 = vld [vmem:[%s1 + $0x13c] sm:$0xf]
        %v410 = vld [vmem:[%s1 + $0x140] sm:$0xf]
        %v411 = vld [vmem:[%s1 + $0x144] sm:$0xf]
        %v412 = vld [vmem:[%s1 + $0x148] sm:$0xf]
        %v413 = vld [vmem:[%s1 + $0x14c] sm:$0xf]
        %v414 = vld [vmem:[%s1 + $0x150] sm:$0xf]
        %v415 = vld [vmem:[%s1 + $0x154] sm:$0xf]
        %v416 = vld [vmem:[%s1 + $0x158] sm:$0xf]
        %v417 = vld [vmem:[%s1 + $0x15c] sm:$0xf]
        %v418 = vld [vmem:[%s1 + $0x160] sm:$0xf]
        %v419 = vld [vmem:[%s1 + $0x164] sm:$0xf]
        %v420 = vld [vmem:[%s1 + $0x168] sm:$0xf]
        %v421 = vld [vmem:[%s1 + $0x16c] sm:$0xf]
        %v422 = vld [vmem:[%s1 + $0x170] sm:$0xf]
        %v423 = vld [vmem:[%s1 + $0x174] sm:$0xf]
        %v424 = vld [vmem:[%s1 + $0x178] sm:$0xf]
        %v425 = vld [vmem:[%s1 + $0x17c] sm:$0xf]
        %v426 = vld [vmem:[%s1 + $0x180] sm:$0xf]
        %v427 = vld [vmem:[%s1 + $0x184] sm:$0xf]
        %v428 = vld [vmem:[%s2] sm:$0x1]
        %v430 = vlaneseq
        %v431 = vshrl.u32 %v430, 7
        %v432 = vsub.s32 0, %v431
        %v433 = vrot.slane %v428, %v432
        %v533 = vunpack.c.l.b16 %v330
        %v534 = vunpack.c.l.b16 %v331
        %v535 = vunpack.c.l.b16 %v332
        %v536 = vunpack.c.l.b16 %v333
        %v537 = vunpack.c.l.b16 %v334
        %v538 = vunpack.c.l.b16 %v335
        %v539 = vunpack.c.l.b16 %v336
        %v540 = vunpack.c.l.b16 %v337
        %v541 = vunpack.c.l.b16 %v338
        %v542 = vunpack.c.l.b16 %v339
        %v543 = vunpack.c.l.b16 %v340
        %v544 = vunpack.c.l.b16 %v341
        %v545 = vunpack.c.l.b16 %v342
        %v546 = vunpack.c.l.b16 %v343
        %v547 = vunpack.c.l.b16 %v344
        %v548 = vunpack.c.l.b16 %v345
        %v549 = vunpack.c.l.b16 %v346
        %v550 = vunpack.c.l.b16 %v347
        %v551 = vunpack.c.l.b16 %v348
        %v552 = vunpack.c.l.b16 %v349
        %v553 = vunpack.c.l.b16 %v350
        %v554 = vunpack.c.l.b16 %v351
        %v555 = vunpack.c.l.b16 %v352
        %v556 = vunpack.c.l.b16 %v353
        %v557 = vunpack.c.l.b16 %v354
        %v558 = vunpack.c.l.b16 %v355
        %v559 = vunpack.c.l.b16 %v356
        %v560 = vunpack.c.l.b16 %v357
        %v561 = vunpack.c.l.b16 %v358
        %v562 = vunpack.c.l.b16 %v359
        %v563 = vunpack.c.l.b16 %v360
        %v564 = vunpack.c.l.b16 %v361
        %v565 = vunpack.c.l.b16 %v362
        %v566 = vunpack.c.l.b16 %v363
        %v567 = vunpack.c.l.b16 %v364
        %v568 = vunpack.c.l.b16 %v365
        %v569 = vunpack.c.l.b16 %v366
        %v570 = vunpack.c.l.b16 %v367
        %v571 = vunpack.c.l.b16 %v368
        %v572 = vunpack.c.l.b16 %v369
        %v573 = vunpack.c.l.b16 %v370
        %v574 = vunpack.c.l.b16 %v371
        %v575 = vunpack.c.l.b16 %v372
        %v576 = vunpack.c.l.b16 %v373
        %v577 = vunpack.c.l.b16 %v374
        %v578 = vunpack.c.l.b16 %v375
        %v579 = vunpack.c.l.b16 %v376
        %v580 = vunpack.c.l.b16 %v377
        %v581 = vunpack.c.l.b16 %v378
        %v582 = vunpack.c.l.b16 %v379
        %v583 = vunpack.c.l.b16 %v380
        %v584 = vunpack.c.l.b16 %v381
        %v585 = vunpack.c.l.b16 %v382
        %v586 = vunpack.c.l.b16 %v383
        %v587 = vunpack.c.l.b16 %v384
        %v588 = vunpack.c.l.b16 %v385
        %v589 = vunpack.c.l.b16 %v386
        %v590 = vunpack.c.l.b16 %v387
        %v591 = vunpack.c.l.b16 %v388
        %v592 = vunpack.c.l.b16 %v389
        %v593 = vunpack.c.l.b16 %v390
        %v594 = vunpack.c.l.b16 %v391
        %v595 = vunpack.c.l.b16 %v392
        %v596 = vunpack.c.l.b16 %v393
        %v597 = vunpack.c.l.b16 %v394
        %v598 = vunpack.c.l.b16 %v395
        %v599 = vunpack.c.l.b16 %v396
        %v600 = vunpack.c.l.b16 %v397
        %v601 = vunpack.c.l.b16 %v398
        %v602 = vunpack.c.l.b16 %v399
        %v603 = vunpack.c.l.b16 %v400
        %v604 = vunpack.c.l.b16 %v401
        %v605 = vunpack.c.l.b16 %v402
        %v606 = vunpack.c.l.b16 %v403
        %v607 = vunpack.c.l.b16 %v404
        %v608 = vunpack.c.l.b16 %v405
        %v609 = vunpack.c.l.b16 %v406
        %v610 = vunpack.c.l.b16 %v407
        %v611 = vunpack.c.l.b16 %v408
        %v612 = vunpack.c.l.b16 %v409
        %v613 = vunpack.c.l.b16 %v410
        %v614 = vunpack.c.l.b16 %v411
        %v615 = vunpack.c.l.b16 %v412
        %v616 = vunpack.c.l.b16 %v413
        %v617 = vunpack.c.l.b16 %v414
        %v618 = vunpack.c.l.b16 %v415
        %v619 = vunpack.c.l.b16 %v416
        %v620 = vunpack.c.l.b16 %v417
        %v621 = vunpack.c.l.b16 %v418
        %v622 = vunpack.c.l.b16 %v419
        %v623 = vunpack.c.l.b16 %v420
        %v624 = vunpack.c.l.b16 %v421
        %v625 = vunpack.c.l.b16 %v422
        %v626 = vunpack.c.l.b16 %v423
        %v627 = vunpack.c.l.b16 %v424
        %v628 = vunpack.c.l.b16 %v425
        %v629 = vunpack.c.l.b16 %v426
        %v630 = vunpack.c.l.b16 %v427
        %v631 = vpack.c.b16 %v534, %v533
        %v632 = vpack.c.b16 %v536, %v535
        %v633 = vpack.c.b16 %v538, %v537
        %v634 = vpack.c.b16 %v540, %v539
        %v635 = vpack.c.b16 %v542, %v541
        %v636 = vpack.c.b16 %v544, %v543
        %v637 = vpack.c.b16 %v546, %v545
        %v638 = vpack.c.b16 %v548, %v547
        %v639 = vpack.c.b16 %v550, %v549
        %v640 = vpack.c.b16 %v552, %v551
        %v641 = vpack.c.b16 %v554, %v553
        %v642 = vpack.c.b16 %v556, %v555
        %v643 = vpack.c.b16 %v558, %v557
        %v644 = vpack.c.b16 %v560, %v559
        %v645 = vpack.c.b16 %v562, %v561
        %v646 = vpack.c.b16 %v564, %v563
        %v647 = vpack.c.b16 %v566, %v565
        %v648 = vpack.c.b16 %v568, %v567
        %v649 = vpack.c.b16 %v570, %v569
        %v650 = vpack.c.b16 %v572, %v571
        %v651 = vpack.c.b16 %v574, %v573
        %v652 = vpack.c.b16 %v576, %v575
        %v653 = vpack.c.b16 %v578, %v577
        %v654 = vpack.c.b16 %v580, %v579
        %v655 = vpack.c.b16 %v582, %v581
        %v656 = vpack.c.b16 %v584, %v583
        %v657 = vpack.c.b16 %v586, %v585
        %v658 = vpack.c.b16 %v588, %v587
        %v659 = vpack.c.b16 %v590, %v589
        %v660 = vpack.c.b16 %v592, %v591
        %v661 = vpack.c.b16 %v594, %v593
        %v662 = vpack.c.b16 %v596, %v595
        %v663 = vpack.c.b16 %v598, %v597
        %v664 = vpack.c.b16 %v600, %v599
        %v665 = vpack.c.b16 %v602, %v601
        %v666 = vpack.c.b16 %v604, %v603
        %v667 = vpack.c.b16 %v606, %v605
        %v668 = vpack.c.b16 %v608, %v607
        %v669 = vpack.c.b16 %v610, %v609
        %v670 = vpack.c.b16 %v612, %v611
        %v671 = vpack.c.b16 %v614, %v613
        %v672 = vpack.c.b16 %v616, %v615
        %v673 = vpack.c.b16 %v618, %v617
        %v674 = vpack.c.b16 %v620, %v619
        %v675 = vpack.c.b16 %v622, %v621
        %v676 = vpack.c.b16 %v624, %v623
        %v677 = vpack.c.b16 %v626, %v625
        %v678 = vpack.c.b16 %v628, %v627
        %v679 = vpack.c.b16 %v630, %v629
        %vm729 = vcmask 130048
        %v731 = vsel %vm729, %v329, 0
        %733 = vmatprep.subr.bf16.mxu0 0
        %734 = vmatpush1.bf16.msra.mxu0 %v638
        %735 = vmatprep.subr.bf16.mxu0 0
        %736 = vmatpush1.bf16.msra.mxu0 %v637
        %737 = vmatprep.subr.bf16.mxu0 0
        %738 = vmatpush1.bf16.msra.mxu0 %v636
        %739 = vmatprep.subr.bf16.mxu0 0
        %740 = vmatpush1.bf16.msra.mxu0 %v635
        %741 = vmatprep.subr.bf16.mxu0 0
        %742 = vmatpush1.bf16.msra.mxu0 %v634
        %743 = vmatprep.subr.bf16.mxu0 0
        %744 = vmatpush1.bf16.msra.mxu0 %v633
        %745 = vmatprep.subr.bf16.mxu0 0
        %746 = vmatpush1.bf16.msra.mxu0 %v632
        %747 = vmatprep.subr.bf16.mxu0 0
        %748 = vmatpush1.bf16.msra.mxu0 %v631
        %749 = vmatprep.subr.bf16.mxu0 0
        %750 = vmatpush2.bf16.msra.mxu0 %v646
        %751 = vmatprep.subr.bf16.mxu0 0
        %752 = vmatpush2.bf16.msra.mxu0 %v645
        %753 = vmatprep.subr.bf16.mxu0 0
        %754 = vmatpush2.bf16.msra.mxu0 %v644
        %755 = vmatprep.subr.bf16.mxu0 0
        %756 = vmatpush2.bf16.msra.mxu0 %v643
        %757 = vmatprep.subr.bf16.mxu0 0
        %758 = vmatpush2.bf16.msra.mxu0 %v642
        %759 = vmatprep.subr.bf16.mxu0 0
        %760 = vmatpush2.bf16.msra.mxu0 %v641
        %761 = vmatprep.subr.bf16.mxu0 0
        %762 = vmatpush2.bf16.msra.mxu0 %v640
        %763 = vmatprep.subr.bf16.mxu0 0
        %764 = vmatpush2.bf16.msra.mxu0 %v639
        %765 = vmatprep.mubr.bf16.mxu0 %v324
        %766 = vmatmul.mubr.bf16.gmra.mxu0 %v323
        %v767 = vpop.f32.mrf.mxu0
        %v768 = vadd.f32 %v433, %v767
        %v769 = vpop.f32.mrf.mxu0
        %v770 = vpop.f32.mrf.mxu0
        %v771 = vadd.f32 %v433, %v770
        %v772 = vpop.f32.mrf.mxu0
        %773 = vdwg.mxu0
        %774 = vmatprep.subr.bf16.mxu0 0
        %775 = vmatpush1.bf16.msra.mxu0 %v654
        %776 = vmatprep.subr.bf16.mxu0 0
        %777 = vmatpush1.bf16.msra.mxu0 %v653
        %778 = vmatprep.subr.bf16.mxu0 0
        %779 = vmatpush1.bf16.msra.mxu0 %v652
        %780 = vmatprep.subr.bf16.mxu0 0
        %781 = vmatpush1.bf16.msra.mxu0 %v651
        %782 = vmatprep.subr.bf16.mxu0 0
        %783 = vmatpush1.bf16.msra.mxu0 %v650
        %784 = vmatprep.subr.bf16.mxu0 0
        %785 = vmatpush1.bf16.msra.mxu0 %v649
        %786 = vmatprep.subr.bf16.mxu0 0
        %787 = vmatpush1.bf16.msra.mxu0 %v648
        %788 = vmatprep.subr.bf16.mxu0 0
        %789 = vmatpush1.bf16.msra.mxu0 %v647
        %790 = vmatprep.subr.bf16.mxu0 0
        %791 = vmatpush2.bf16.msra.mxu0 %v662
        %792 = vmatprep.subr.bf16.mxu0 0
        %793 = vmatpush2.bf16.msra.mxu0 %v661
        %794 = vmatprep.subr.bf16.mxu0 0
        %795 = vmatpush2.bf16.msra.mxu0 %v660
        %796 = vmatprep.subr.bf16.mxu0 0
        %797 = vmatpush2.bf16.msra.mxu0 %v659
        %798 = vmatprep.subr.bf16.mxu0 0
        %799 = vmatpush2.bf16.msra.mxu0 %v658
        %800 = vmatprep.subr.bf16.mxu0 0
        %801 = vmatpush2.bf16.msra.mxu0 %v657
        %802 = vmatprep.subr.bf16.mxu0 0
        %803 = vmatpush2.bf16.msra.mxu0 %v656
        %804 = vmatprep.subr.bf16.mxu0 0
        %805 = vmatpush2.bf16.msra.mxu0 %v655
        %806 = vmatprep.mubr.bf16.mxu0 %v326
        %807 = vmatmul.mubr.bf16.gmra.mxu0 %v325
        %v808 = vpop.f32.mrf.mxu0
        %v809 = vadd.f32 %v768, %v808
        %v810 = vpop.f32.mrf.mxu0
        %v811 = vpop.f32.mrf.mxu0
        %v812 = vadd.f32 %v771, %v811
        %v813 = vpop.f32.mrf.mxu0
        %814 = vdwg.mxu0
        %815 = vmatprep.subr.bf16.mxu0 0
        %816 = vmatpush1.bf16.msra.mxu0 %v670
        %817 = vmatprep.subr.bf16.mxu0 0
        %818 = vmatpush1.bf16.msra.mxu0 %v669
        %819 = vmatprep.subr.bf16.mxu0 0
        %820 = vmatpush1.bf16.msra.mxu0 %v668
        %821 = vmatprep.subr.bf16.mxu0 0
        %822 = vmatpush1.bf16.msra.mxu0 %v667
        %823 = vmatprep.subr.bf16.mxu0 0
        %824 = vmatpush1.bf16.msra.mxu0 %v666
        %825 = vmatprep.subr.bf16.mxu0 0
        %826 = vmatpush1.bf16.msra.mxu0 %v665
        %827 = vmatprep.subr.bf16.mxu0 0
        %828 = vmatpush1.bf16.msra.mxu0 %v664
        %829 = vmatprep.subr.bf16.mxu0 0
        %830 = vmatpush1.bf16.msra.mxu0 %v663
        %831 = vmatprep.subr.bf16.mxu0 0
        %832 = vmatpush2.bf16.msra.mxu0 %v678
        %833 = vmatprep.subr.bf16.mxu0 0
        %834 = vmatpush2.bf16.msra.mxu0 %v677
        %835 = vmatprep.subr.bf16.mxu0 0
        %836 = vmatpush2.bf16.msra.mxu0 %v676
        %837 = vmatprep.subr.bf16.mxu0 0
        %838 = vmatpush2.bf16.msra.mxu0 %v675
        %839 = vmatprep.subr.bf16.mxu0 0
        %840 = vmatpush2.bf16.msra.mxu0 %v674
        %841 = vmatprep.subr.bf16.mxu0 0
        %842 = vmatpush2.bf16.msra.mxu0 %v673
        %843 = vmatprep.subr.bf16.mxu0 0
        %844 = vmatpush2.bf16.msra.mxu0 %v672
        %845 = vmatprep.subr.bf16.mxu0 0
        %846 = vmatpush2.bf16.msra.mxu0 %v671
        %847 = vmatprep.mubr.bf16.mxu0 %v328
        %848 = vmatmul.mubr.bf16.gmra.mxu0 %v327
        %v849 = vpop.f32.mrf.mxu0
        %v850 = vadd.f32 %v809, %v849
        %v851 = vpop.f32.mrf.mxu0
        %v852 = vpop.f32.mrf.mxu0
        %v853 = vadd.f32 %v812, %v852
        %v854 = vpop.f32.mrf.mxu0
        %855 = vdwg.mxu0
        %856 = vmatprep.subr.bf16.mxu0 0
        %857 = vmatpush1.bf16.msra.mxu0 0
        %858 = vmatprep.subr.bf16.mxu0 0
        %859 = vmatpush1.bf16.msra.mxu0 0
        %860 = vmatprep.subr.bf16.mxu0 0
        %861 = vmatpush1.bf16.msra.mxu0 0
        %862 = vmatprep.subr.bf16.mxu0 0
        %863 = vmatpush1.bf16.msra.mxu0 0
        %864 = vmatprep.subr.bf16.mxu0 0
        %865 = vmatpush1.bf16.msra.mxu0 0
        %866 = vmatprep.subr.bf16.mxu0 0
        %867 = vmatpush1.bf16.msra.mxu0 0
        %868 = vmatprep.subr.bf16.mxu0 0
        %869 = vmatpush1.bf16.msra.mxu0 0
        %870 = vmatprep.subr.bf16.mxu0 0
        %871 = vmatpush1.bf16.msra.mxu0 %v679
        %872 = vmatprep.subr.bf16.mxu0 0
        %873 = vmatpush2.bf16.msra.mxu0 0
        %874 = vmatprep.subr.bf16.mxu0 0
        %875 = vmatpush2.bf16.msra.mxu0 0
        %876 = vmatprep.subr.bf16.mxu0 0
        %877 = vmatpush2.bf16.msra.mxu0 0
        %878 = vmatprep.subr.bf16.mxu0 0
        %879 = vmatpush2.bf16.msra.mxu0 0
        %880 = vmatprep.subr.bf16.mxu0 0
        %881 = vmatpush2.bf16.msra.mxu0 0
        %882 = vmatprep.subr.bf16.mxu0 0
        %883 = vmatpush2.bf16.msra.mxu0 0
        %884 = vmatprep.subr.bf16.mxu0 0
        %885 = vmatpush2.bf16.msra.mxu0 0
        %886 = vmatprep.subr.bf16.mxu0 0
        %887 = vmatpush2.bf16.msra.mxu0 0
        %888 = vmatprep.mubr.bf16.mxu0 0
        %889 = vmatmul.mubr.bf16.gmra.mxu0 %v731
        %v890 = vpop.f32.mrf.mxu0
        %v891 = vadd.f32 %v850, %v890
        %v892 = vpop.f32.mrf.mxu0
        %v893 = vpop.f32.mrf.mxu0
        %v894 = vadd.f32 %v853, %v893
        %v895 = vpop.f32.mrf.mxu0
        %896 = vdwg.mxu0
        %v897 = vmax.f32 %v891, 0.0
        %v898 = vmax.f32 %v894, 0.0
        %v899 = vpack.c.bf16 %v898, %v897
        %v900 = vld [vmem:[%s3] sm:$0xf]
        %v901 = vld [vmem:[%s3 + $0x4] sm:$0xf]
        %v902 = vld [vmem:[%s3 + $0x8] sm:$0xf]
        %v903 = vld [vmem:[%s3 + $0xc] sm:$0xf]
        %v904 = vld [vmem:[%s3 + $0x10] sm:$0xf]
        %v905 = vld [vmem:[%s3 + $0x14] sm:$0xf]
        %v906 = vld [vmem:[%s3 + $0x18] sm:$0xf]
        %v907 = vld [vmem:[%s3 + $0x1c] sm:$0xf]
        %v908 = vld [vmem:[%s3 + $0x20] sm:$0xf]
        %v909 = vld [vmem:[%s3 + $0x24] sm:$0xf]
        %v910 = vld [vmem:[%s3 + $0x28] sm:$0xf]
        %v911 = vld [vmem:[%s3 + $0x2c] sm:$0xf]
        %v912 = vld [vmem:[%s3 + $0x30] sm:$0xf]
        %v913 = vld [vmem:[%s3 + $0x34] sm:$0xf]
        %v914 = vld [vmem:[%s3 + $0x38] sm:$0xf]
        %v915 = vld [vmem:[%s3 + $0x3c] sm:$0xf]
        %v916 = vld [vmem:[%s4] sm:$0x1]
        %v918 = vlaneseq
        %v919 = vshrl.u32 %v918, 7
        %v920 = vsub.s32 0, %v919
        %v921 = vrot.slane %v916, %v920
        %v939 = vunpack.c.l.b16 %v900
        %v940 = vunpack.c.l.b16 %v901
        %v941 = vunpack.c.l.b16 %v902
        %v942 = vunpack.c.l.b16 %v903
        %v943 = vunpack.c.l.b16 %v904
        %v944 = vunpack.c.l.b16 %v905
        %v945 = vunpack.c.l.b16 %v906
        %v946 = vunpack.c.l.b16 %v907
        %v947 = vunpack.c.l.b16 %v908
        %v948 = vunpack.c.l.b16 %v909
        %v949 = vunpack.c.l.b16 %v910
        %v950 = vunpack.c.l.b16 %v911
        %v951 = vunpack.c.l.b16 %v912
        %v952 = vunpack.c.l.b16 %v913
        %v953 = vunpack.c.l.b16 %v914
        %v954 = vunpack.c.l.b16 %v915
        %v955 = vpack.c.b16 %v940, %v939
        %v956 = vpack.c.b16 %v942, %v941
        %v957 = vpack.c.b16 %v944, %v943
        %v958 = vpack.c.b16 %v946, %v945
        %v959 = vpack.c.b16 %v948, %v947
        %v960 = vpack.c.b16 %v950, %v949
        %v961 = vpack.c.b16 %v952, %v951
        %v962 = vpack.c.b16 %v954, %v953
        %971 = vmatprep.subr.bf16.mxu0 0
        %972 = vmatpush1.bf16.msra.mxu0 %v962
        %973 = vmatprep.subr.bf16.mxu0 0
        %974 = vmatpush1.bf16.msra.mxu0 %v961
        %975 = vmatprep.subr.bf16.mxu0 0
        %976 = vmatpush1.bf16.msra.mxu0 %v960
        %977 = vmatprep.subr.bf16.mxu0 0
        %978 = vmatpush1.bf16.msra.mxu0 %v959
        %979 = vmatprep.subr.bf16.mxu0 0
        %980 = vmatpush1.bf16.msra.mxu0 %v958
        %981 = vmatprep.subr.bf16.mxu0 0
        %982 = vmatpush1.bf16.msra.mxu0 %v957
        %983 = vmatprep.subr.bf16.mxu0 0
        %984 = vmatpush1.bf16.msra.mxu0 %v956
        %985 = vmatprep.subr.bf16.mxu0 0
        %986 = vmatpush1.bf16.msra.mxu0 %v955
        %987 = vmatprep.subr.bf16.mxu0 0
        %988 = vmatpush2.bf16.msra.mxu0 0
        %989 = vmatprep.subr.bf16.mxu0 0
        %990 = vmatpush2.bf16.msra.mxu0 0
        %991 = vmatprep.subr.bf16.mxu0 0
        %992 = vmatpush2.bf16.msra.mxu0 0
        %993 = vmatprep.subr.bf16.mxu0 0
        %994 = vmatpush2.bf16.msra.mxu0 0
        %995 = vmatprep.subr.bf16.mxu0 0
        %996 = vmatpush2.bf16.msra.mxu0 0
        %997 = vmatprep.subr.bf16.mxu0 0
        %998 = vmatpush2.bf16.msra.mxu0 0
        %999 = vmatprep.subr.bf16.mxu0 0
        %1000 = vmatpush2.bf16.msra.mxu0 0
        %1001 = vmatprep.subr.bf16.mxu0 0
        %1002 = vmatpush2.bf16.msra.mxu0 0
        %1003 = vmatprep.mubr.bf16.mxu0 0
        %1004 = vmatmul.mubr.bf16.gmra.mxu0 %v899
        %v1005 = vpop.f32.mrf.mxu0
        %v1006 = vadd.f32 %v921, %v1005
        %v1007 = vpop.f32.mrf.mxu0
        %v1008 = vpop.f32.mrf.mxu0
        %v1009 = vadd.f32 %v921, %v1008
        %v1010 = vpop.f32.mrf.mxu0
        %1011 = vdwg.mxu0
        %v1012 = vmax.f32 %v1006, 0.0
        %v1013 = vmax.f32 %v1009, 0.0
        %v1014 = vpack.c.bf16 %v1013, %v1012
        %v1015 = vld [vmem:[%s5] sm:$0xf]
        %v1016 = vld [vmem:[%s5 + $0x4] sm:$0xf]
        %v1017 = vld [vmem:[%s5 + $0x8] sm:$0xf]
        %v1018 = vld [vmem:[%s5 + $0xc] sm:$0xf]
        %v1019 = vld [vmem:[%s5 + $0x10] sm:$0xf]
        %v1020 = vld [vmem:[%s5 + $0x14] sm:$0xf]
        %v1021 = vld [vmem:[%s5 + $0x18] sm:$0xf]
        %v1022 = vld [vmem:[%s5 + $0x1c] sm:$0xf]
        %v1023 = vld [vmem:[%s5 + $0x20] sm:$0xf]
        %v1024 = vld [vmem:[%s5 + $0x24] sm:$0xf]
        %v1025 = vld [vmem:[%s5 + $0x28] sm:$0xf]
        %v1026 = vld [vmem:[%s5 + $0x2c] sm:$0xf]
        %v1027 = vld [vmem:[%s5 + $0x30] sm:$0xf]
        %v1028 = vld [vmem:[%s5 + $0x34] sm:$0xf]
        %v1029 = vld [vmem:[%s5 + $0x38] sm:$0xf]
        %v1030 = vld [vmem:[%s5 + $0x3c] sm:$0xf]
        %v1031 = vld [vmem:[%s6] sm:$0x1]
        %v1033 = vlaneseq
        %v1034 = vshrl.u32 %v1033, 7
        %v1035 = vsub.s32 0, %v1034
        %v1036 = vrot.slane %v1031, %v1035
        %v1054 = vunpack.c.l.b16 %v1015
        %v1055 = vunpack.c.l.b16 %v1016
        %v1056 = vunpack.c.l.b16 %v1017
        %v1057 = vunpack.c.l.b16 %v1018
        %v1058 = vunpack.c.l.b16 %v1019
        %v1059 = vunpack.c.l.b16 %v1020
        %v1060 = vunpack.c.l.b16 %v1021
        %v1061 = vunpack.c.l.b16 %v1022
        %v1062 = vunpack.c.l.b16 %v1023
        %v1063 = vunpack.c.l.b16 %v1024
        %v1064 = vunpack.c.l.b16 %v1025
        %v1065 = vunpack.c.l.b16 %v1026
        %v1066 = vunpack.c.l.b16 %v1027
        %v1067 = vunpack.c.l.b16 %v1028
        %v1068 = vunpack.c.l.b16 %v1029
        %v1069 = vunpack.c.l.b16 %v1030
        %v1070 = vpack.c.b16 %v1055, %v1054
        %v1071 = vpack.c.b16 %v1057, %v1056
        %v1072 = vpack.c.b16 %v1059, %v1058
        %v1073 = vpack.c.b16 %v1061, %v1060
        %v1074 = vpack.c.b16 %v1063, %v1062
        %v1075 = vpack.c.b16 %v1065, %v1064
        %v1076 = vpack.c.b16 %v1067, %v1066
        %v1077 = vpack.c.b16 %v1069, %v1068
        %1086 = vmatprep.subr.bf16.mxu0 0
        %1087 = vmatpush1.bf16.msra.mxu0 %v1077
        %1088 = vmatprep.subr.bf16.mxu0 0
        %1089 = vmatpush1.bf16.msra.mxu0 %v1076
        %1090 = vmatprep.subr.bf16.mxu0 0
        %1091 = vmatpush1.bf16.msra.mxu0 %v1075
        %1092 = vmatprep.subr.bf16.mxu0 0
        %1093 = vmatpush1.bf16.msra.mxu0 %v1074
        %1094 = vmatprep.subr.bf16.mxu0 0
        %1095 = vmatpush1.bf16.msra.mxu0 %v1073
        %1096 = vmatprep.subr.bf16.mxu0 0
        %1097 = vmatpush1.bf16.msra.mxu0 %v1072
        %1098 = vmatprep.subr.bf16.mxu0 0
        %1099 = vmatpush1.bf16.msra.mxu0 %v1071
        %1100 = vmatprep.subr.bf16.mxu0 0
        %1101 = vmatpush1.bf16.msra.mxu0 %v1070
        %1102 = vmatprep.subr.bf16.mxu0 0
        %1103 = vmatpush2.bf16.msra.mxu0 0
        %1104 = vmatprep.subr.bf16.mxu0 0
        %1105 = vmatpush2.bf16.msra.mxu0 0
        %1106 = vmatprep.subr.bf16.mxu0 0
        %1107 = vmatpush2.bf16.msra.mxu0 0
        %1108 = vmatprep.subr.bf16.mxu0 0
        %1109 = vmatpush2.bf16.msra.mxu0 0
        %1110 = vmatprep.subr.bf16.mxu0 0
        %1111 = vmatpush2.bf16.msra.mxu0 0
        %1112 = vmatprep.subr.bf16.mxu0 0
        %1113 = vmatpush2.bf16.msra.mxu0 0
        %1114 = vmatprep.subr.bf16.mxu0 0
        %1115 = vmatpush2.bf16.msra.mxu0 0
        %1116 = vmatprep.subr.bf16.mxu0 0
        %1117 = vmatpush2.bf16.msra.mxu0 0
        %1118 = vmatprep.mubr.bf16.mxu0 0
        %1119 = vmatmul.mubr.bf16.gmra.mxu0 %v1014
        %v1120 = vpop.f32.mrf.mxu0
        %v1121 = vadd.f32 %v1036, %v1120
        %v1122 = vpop.f32.mrf.mxu0
        %v1123 = vpop.f32.mrf.mxu0
        %v1124 = vadd.f32 %v1036, %v1123
        %v1125 = vpop.f32.mrf.mxu0
        %1126 = vdwg.mxu0
        %vm1127 = vcmask 80896
        %1128 = vst.msk [vmem:[%s285] sm:$0xff] %vm1127, %v1121
        %1129 = vst.msk [vmem:[%s285 + $0x8] sm:$0xff] %vm1127, %v1124
        %s1130 = sand.u32 %s178, 1
        %s1131 = sand.u32 %s178, 1
        %s1132 = smul.addr %s1131, 16
        %s1133 = scalar_lea.vmem [#allocation2], %s1132
        // Predicated region
        $region49: #{mnist_fc_forward.1} parent=47 // pred_check
          %p1134 = pneg %p188
        $region50: #{mnist_fc_forward.1} parent=47 // pred_check_branch
          %1136 = sbr.rel (%p1134) target = $region52
        $region51: #{mnist_fc_forward.1} parent=47 // pred_region
          %s1137 = smul.u32 2, %s18
          %s1138 = ssub.s32 5, %s1137
          %p1139 = scmp.lt.s32.totalorder %s1138, 2
          %s1140 = scalar_select %p1139, %s1138, 2
          %s1141 = smul.u32 128, %s1140
          %p1142 = scmp.ne.s32.totalorder 0, %s1141
          %s1143 = smul.addr %s1137, 8
          %s1144 = scalar_lea.vmem %s7, %s1143
          // Predicated region
          $region53: #{mnist_fc_forward.1} parent=51 // pred_check
            %p1145 = pneg %p1142
          $region54: #{mnist_fc_forward.1} parent=51 // pred_check_branch
            %1147 = sbr.rel (%p1145) target = $region56
          $region55: #{mnist_fc_forward.1} parent=51 // pred_region
            // Predicated region
            $region57: #{mnist_fc_forward.1} parent=55 // pred_check
              _
            $region58: #{mnist_fc_forward.1} parent=55 // pred_check_branch
              %1149 = sbr.rel (0) target = $region60
            $region59: #{mnist_fc_forward.1} parent=55 // pred_region
              // Predicated region
              $region79: #{mnist_fc_forward.1} parent=59 // pred_check
                _
              $region80: #{mnist_fc_forward.1} parent=59 // pred_check_branch
                %1201 = sbr.rel (0) target = $region82
              $region81: #{mnist_fc_forward.1} parent=59 // pred_region
                %s1202 = sshrl.u32 %s1140, 1
                // While loop
                $region83: #{mnist_fc_forward.1} parent=81 // loop_pre_header
                  _
                $region84: #{mnist_fc_forward.1} parent=81 // loop_header
                  %s1204 = sphi 0, %s1206
                  %p1205 = scmp.ge.s32.totalorder %s1204, %s1202
                  %s1209 = sphi 0, %s1218
                  %s1210 = sphi %s1133, %s1221
                  %s1211 = sphi %s1144, %s1222
                $region85: #{mnist_fc_forward.1} parent=81 // loop_header_branch
                  %1208 = sbr.rel (%p1205) target = $region89
                $region86: #{mnist_fc_forward.1} parent=81 // loop_body
                  %v1212 = vld [vmem:[%s1210] sm:$0xff]
                  %1213 = vst [vmem:[%s1211] sm:$0xff] %v1212
                  %v1214 = vld [vmem:[%s1210 + $0x8] sm:$0xff]
                  %1215 = vst [vmem:[%s1211 + $0x8] sm:$0xff] %v1214
                  %s1216 = sadd.s32 1, %s1209
                  %p1217 = scmp.ge.s32.totalorder %s1216, %s1202
                  %s1218 = scalar_select %p1217, 0, %s1216
                  %s1219 = smul.u32 %s1218, 16
                  %s1220 = smul.u32 %s1218, 16
                  %s1221 = scalar_lea.vmem %s1133, %s1219 [#allocation2]
                  %s1222 = scalar_lea.vmem %s1144, %s1220
                $region87: #{mnist_fc_forward.1} parent=81 // loop_footer
                  %s1206 = sadd.s32 %s1204, 1
                $region88: #{mnist_fc_forward.1} parent=81 // loop_footer_branch
                  %1203 = sbr.rel target = $region84
                $region89: #{mnist_fc_forward.1} parent=81 // loop_exit
                  _
                %s1223 = sshrl.u32 %s1140, 1
                %s1224 = sand.u32 %s1140, 1
                %s1225 = smul.u32 %s1223, 2
                %s1226 = smul.u32 8, %s1225
                %s1227 = scalar_lea.vmem %s1133, %s1226 [#allocation2]
                %s1228 = smul.u32 8, %s1225
                %s1229 = scalar_lea.vmem %s1144, %s1228
                // While loop
                $region90: #{mnist_fc_forward.1} parent=81 // loop_pre_header
                  _
                $region91: #{mnist_fc_forward.1} parent=81 // loop_header
                  %s1231 = sphi 0, %s1233
                  %p1232 = scmp.ge.s32.totalorder %s1231, %s1224
                  %s1236 = sphi 0, %s1243
                  %s1237 = sphi %s1227, %s1246
                  %s1238 = sphi %s1229, %s1247
                $region92: #{mnist_fc_forward.1} parent=81 // loop_header_branch
                  %1235 = sbr.rel (%p1232) target = $region96
                $region93: #{mnist_fc_forward.1} parent=81 // loop_body
                  %v1239 = vld [vmem:[%s1237] sm:$0xff]
                  %1240 = vst [vmem:[%s1238] sm:$0xff] %v1239
                  %s1241 = sadd.s32 1, %s1236
                  %p1242 = scmp.ge.s32.totalorder %s1241, %s1224
                  %s1243 = scalar_select %p1242, 0, %s1241
                  %s1244 = smul.u32 %s1243, 8
                  %s1245 = smul.u32 %s1243, 8
                  %s1246 = scalar_lea.vmem %s1227, %s1244 [#allocation2]
                  %s1247 = scalar_lea.vmem %s1229, %s1245
                $region94: #{mnist_fc_forward.1} parent=81 // loop_footer
                  %s1233 = sadd.s32 %s1231, 1
                $region95: #{mnist_fc_forward.1} parent=81 // loop_footer_branch
                  %1230 = sbr.rel target = $region91
                $region96: #{mnist_fc_forward.1} parent=81 // loop_exit
                  _
              $region82: #{mnist_fc_forward.1} parent=59 // pred_fallthru
                _
              // Predicated region
              $region97: #{mnist_fc_forward.1} parent=59 // pred_check
                _
              $region98: #{mnist_fc_forward.1} parent=59 // pred_check_branch
                %1249 = sbr.rel target = $region100
              $region99: #{mnist_fc_forward.1} parent=59 // pred_region
                _
              $region100: #{mnist_fc_forward.1} parent=59 // pred_fallthru
                _
            $region60: #{mnist_fc_forward.1} parent=55 // pred_fallthru
              _
            // Predicated region
            $region61: #{mnist_fc_forward.1} parent=55 // pred_check
              _
            $region62: #{mnist_fc_forward.1} parent=55 // pred_check_branch
              %1151 = sbr.rel target = $region64
            $region63: #{mnist_fc_forward.1} parent=55 // pred_region
              %s1153 = ssub.s32 256, 1
              %s1154 = sshrl.u32 %s1140, 1
              // While loop
              $region65: #{mnist_fc_forward.1} parent=63 // loop_pre_header
                _
              $region66: #{mnist_fc_forward.1} parent=63 // loop_header
                %s1156 = sphi 0, %s1158
                %p1157 = scmp.ge.s32.totalorder %s1156, %s1154
                %s1161 = sphi 0, %s1170
                %s1162 = sphi %s1133, %s1173
                %s1163 = sphi %s1144, %s1174
              $region67: #{mnist_fc_forward.1} parent=63 // loop_header_branch
                %1160 = sbr.rel (%p1157) target = $region71
              $region68: #{mnist_fc_forward.1} parent=63 // loop_body
                %v1164 = vld [vmem:[%s1162] sm:%s1153]
                %1165 = vst [vmem:[%s1163] sm:%s1153] %v1164
                %v1166 = vld [vmem:[%s1162 + $0x8] sm:%s1153]
                %1167 = vst [vmem:[%s1163 + $0x8] sm:%s1153] %v1166
                %s1168 = sadd.s32 1, %s1161
                %p1169 = scmp.ge.s32.totalorder %s1168, %s1154
                %s1170 = scalar_select %p1169, 0, %s1168
                %s1171 = smul.u32 %s1170, 16
                %s1172 = smul.u32 %s1170, 16
                %s1173 = scalar_lea.vmem %s1133, %s1171 [#allocation2]
                %s1174 = scalar_lea.vmem %s1144, %s1172
              $region69: #{mnist_fc_forward.1} parent=63 // loop_footer
                %s1158 = sadd.s32 %s1156, 1
              $region70: #{mnist_fc_forward.1} parent=63 // loop_footer_branch
                %1155 = sbr.rel target = $region66
              $region71: #{mnist_fc_forward.1} parent=63 // loop_exit
                _
              %s1175 = sshrl.u32 %s1140, 1
              %s1176 = sand.u32 %s1140, 1
              %s1177 = smul.u32 %s1175, 2
              %s1178 = smul.u32 8, %s1177
              %s1179 = scalar_lea.vmem %s1133, %s1178 [#allocation2]
              %s1180 = smul.u32 8, %s1177
              %s1181 = scalar_lea.vmem %s1144, %s1180
              // While loop
              $region72: #{mnist_fc_forward.1} parent=63 // loop_pre_header
                _
              $region73: #{mnist_fc_forward.1} parent=63 // loop_header
                %s1183 = sphi 0, %s1185
                %p1184 = scmp.ge.s32.totalorder %s1183, %s1176
                %s1188 = sphi 0, %s1195
                %s1189 = sphi %s1179, %s1198
                %s1190 = sphi %s1181, %s1199
              $region74: #{mnist_fc_forward.1} parent=63 // loop_header_branch
                %1187 = sbr.rel (%p1184) target = $region78
              $region75: #{mnist_fc_forward.1} parent=63 // loop_body
                %v1191 = vld [vmem:[%s1189] sm:%s1153]
                %1192 = vst [vmem:[%s1190] sm:%s1153] %v1191
                %s1193 = sadd.s32 1, %s1188
                %p1194 = scmp.ge.s32.totalorder %s1193, %s1176
                %s1195 = scalar_select %p1194, 0, %s1193
                %s1196 = smul.u32 %s1195, 8
                %s1197 = smul.u32 %s1195, 8
                %s1198 = scalar_lea.vmem %s1179, %s1196 [#allocation2]
                %s1199 = scalar_lea.vmem %s1181, %s1197
              $region76: #{mnist_fc_forward.1} parent=63 // loop_footer
                %s1185 = sadd.s32 %s1183, 1
              $region77: #{mnist_fc_forward.1} parent=63 // loop_footer_branch
                %1182 = sbr.rel target = $region73
              $region78: #{mnist_fc_forward.1} parent=63 // loop_exit
                _
            $region64: #{mnist_fc_forward.1} parent=55 // pred_fallthru
              _
          $region56: #{mnist_fc_forward.1} parent=51 // pred_fallthru
            _
          %1250 = vnop
        $region52: #{mnist_fc_forward.1} parent=47 // pred_fallthru
          _
      $region48: #{mnist_fc_forward.1} parent=5 // pred_fallthru
        _
      %p1251 = scmp.le.s32.totalorder 2, %s13
      // Predicated region
      $region101: #{mnist_fc_forward.1} parent=5 // pred_check
        %p1252 = pneg %p1251
      $region102: #{mnist_fc_forward.1} parent=5 // pred_check_branch
        %1254 = sbr.rel (%p1252) target = $region104
      $region103: #{mnist_fc_forward.1} parent=5 // pred_region
        %s1255 = ssub.s32 %s13, 2
        // Predicated region
        $region105: #{mnist_fc_forward.1} parent=103 // pred_check
          %p1256 = pneg %p194
        $region106: #{mnist_fc_forward.1} parent=103 // pred_check_branch
          %1258 = sbr.rel (%p1256) target = $region108
        $region107: #{mnist_fc_forward.1} parent=103 // pred_region
          %s1259 = sand.u32 %s179, 1
          %s1260 = sand.u32 %s179, 1
          %s1261 = smul.addr %s1260, 16
          %s1262 = scalar_lea.vmem [#allocation2], %s1261
        $region108: #{mnist_fc_forward.1} parent=103 // pred_fallthru
          _
      $region104: #{mnist_fc_forward.1} parent=5 // pred_fallthru
        _
    $region6: #{mnist_fc_forward.1} parent=1 // loop_footer
      %s17 = sadd.s32 1, %s13
    $region7: #{mnist_fc_forward.1} parent=1 // loop_footer_branch
      %12 = sbr.rel target = $region3
    $region8: #{mnist_fc_forward.1} parent=1 // loop_exit
      _

</llo_original>
